<compile_context>
chip_gen: v6e
topology: v6e:2x2x1
jax: 0.10.0
libtpu: 0.0.40
codegen_flags: <defaults>
</compile_context>

<pallas_src>
import functools

import jax
import jax.numpy as jnp
from jax.experimental import pallas as pl
from jax.experimental.pallas import tpu as pltpu


# --------------------------------------------------------------------------
# Kernel
# --------------------------------------------------------------------------
def _transition_kernel(x_ref, ln_g_ref, ln_b_ref,
                       wab_ref, bab_ref, wo_ref, bo_ref,
                       o_ref, *, hid, chunk):
    """One row tile: LN (f32) -> fused (wa|wb) bf16 matmuls -> silu*gate -> wo."""
    x = x_ref[...].astype(jnp.float32)                        # (tm, D)

    # --- LayerNorm over the last dim in f32 (eps matches nn.LayerNorm) ---
    mu = jnp.mean(x, axis=-1, keepdims=True)
    xc = x - mu
    var = jnp.mean(xc * xc, axis=-1, keepdims=True)
    xn = xc * jax.lax.rsqrt(var + 1e-5)
    xn = xn * ln_g_ref[...] + ln_b_ref[...]                   # (tm, D) f32
    xn16 = xn.astype(jnp.bfloat16)                            # MXU input

    def gated_chunk(off_a, off_b):
        """silu(a_c) * b_c @ wo_c for one 128-lane-aligned hidden chunk."""
        a = jnp.dot(xn16, wab_ref[:, pl.ds(off_a, chunk)],
                    preferred_element_type=jnp.float32) + bab_ref[:, pl.ds(off_a, chunk)]
        b = jnp.dot(xn16, wab_ref[:, pl.ds(off_b, chunk)],
                    preferred_element_type=jnp.float32) + bab_ref[:, pl.ds(off_b, chunk)]
        h = (a * jax.nn.sigmoid(a)) * b                        # silu(a) * b, f32
        return jnp.dot(h.astype(jnp.bfloat16), wo_ref[pl.ds(off_a, chunk), :],
                       preferred_element_type=jnp.float32)     # (tm, D) f32

    n_chunks = hid // chunk
    if n_chunks == 1:
        out = gated_chunk(0, hid)
    elif n_chunks <= 8:
        # Static offsets (zero-cost slices); realistic AF3 hidden sizes land here.
        out = gated_chunk(0, hid)
        for c in range(1, n_chunks):
            out = out + gated_chunk(c * chunk, hid + c * chunk)
    else:
        # Very large H: bound live ranges with a real loop, 128-aligned dynamic slices.
        def body(c, acc):
            off_a = pl.multiple_of(c * chunk, 128)
            off_b = pl.multiple_of(c * chunk + hid, 128)
            return acc + gated_chunk(off_a, off_b)
        out = jax.lax.fori_loop(1, n_chunks, body, gated_chunk(0, hid))

    o_ref[...] = (out + bo_ref[...]).astype(o_ref.dtype)


# --------------------------------------------------------------------------
# VMEM budgeting / tiling heuristics
# --------------------------------------------------------------------------
def _physical_vmem_bytes():
    try:
        return int(pltpu.get_tpu_info().vmem_capacity_bytes)
    except Exception:
        return 64 << 20          # conservative fallback (v7x per-TensorCore VMEM)


def _vmem_estimate(tile_m, dim, hid, chunk, weight_bufs):
    bf16, f32 = 2, 4
    io_tiles = 2 * 2 * tile_m * dim * f32                     # x + out, double-buffered
    weights = weight_bufs * (dim * 2 * hid * bf16             # wab
                             + 2 * hid * f32                  # bab
                             + hid * dim * bf16               # wo
                             + dim * f32                      # bo
                             + 2 * dim * f32)                  # ln gamma / beta
    interm = tile_m * (2 * dim + 4 * chunk) * f32              # xn, acc, live a/b/h chunk slabs
    return int(1.25 * (io_tiles + weights + interm))


def _pick_chunk(hid):
    """Largest 128-multiple chunk (<=512) dividing hid; hid is a 128-multiple."""
    if hid <= 512:
        return hid
    for c in (512, 256, 128):
        if hid % c == 0:
            return c
    return hid


def _pick_tile_m(n_rows, dim, hid, chunk, budget, weight_bufs):
    row_cap = max(8, min(1024, pl.cdiv(n_rows, 8) * 8))        # don't exceed (rounded) M
    for cand in (1024, 512, 256, 128, 64, 32, 16, 8):
        tm = min(cand, row_cap)
        if _vmem_estimate(tm, dim, hid, chunk, weight_bufs) <= budget:
            return tm
    raise ValueError(
        f"Transition weights (dim={dim}, hid={hid}) exceed the VMEM budget "
        f"({budget} bytes) even at tile_m=8. Stream the hidden dimension over "
        "a grid axis (not implemented) or shrink the model dims.")


# --------------------------------------------------------------------------
# pallas_call construction
# --------------------------------------------------------------------------
def _build_transition_call(n_rows, dim, hid, tile_m, chunk, vmem_limit,
                           out_dtype, single_buffer_weights):
    row_map = lambda i: (i, 0)
    full_map = lambda i: (0, 0)

    def resident(shape):
        # Grid-invariant operand: never re-DMA'd, so one VMEM buffer suffices.
        if single_buffer_weights:
            return pl.BlockSpec(shape, full_map, pipeline_mode=pl.Buffered(1))
        return pl.BlockSpec(shape, full_map)

    kernel = functools.partial(_transition_kernel, hid=hid, chunk=chunk)
    return pl.pallas_call(
        kernel,
        out_shape=jax.ShapeDtypeStruct((n_rows, dim), out_dtype),
        grid_spec=pltpu.PrefetchScalarGridSpec(
            num_scalar_prefetch=0,
            grid=(pl.cdiv(n_rows, tile_m),),
            in_specs=[
                pl.BlockSpec((tile_m, dim), row_map),          # x rows (double-buffered)
                resident((1, dim)),                            # ln gamma (f32)
                resident((1, dim)),                            # ln beta  (f32)
                resident((dim, 2 * hid)),                      # wa|wb fused (bf16)
                resident((1, 2 * hid)),                        # ba|bb fused (f32)
                resident((hid, dim)),                          # wo (bf16)
                resident((1, dim)),                            # bo (f32)
            ],
            out_specs=pl.BlockSpec((tile_m, dim), row_map),
        ),
        compiler_params=pltpu.CompilerParams(
            dimension_semantics=("parallel",),                  # megacore-shard rows on v7x
            vmem_limit_bytes=vmem_limit),
    )


def transition_pallas(x, kparams, *, tile_m=None):
    """x: [..., D] float32.  kparams: packed kernel params (see pack_params)."""
    orig_shape = x.shape
    dim = orig_shape[-1]
    hid = kparams["wab"].shape[1] // 2
    assert hid % 128 == 0, "pack_params must pad the hidden dim to a multiple of 128"
    chunk = _pick_chunk(hid)

    x2 = x.reshape(-1, dim)
    n_rows = x2.shape[0]

    budget = int(0.85 * _physical_vmem_bytes())                # generation-aware cap

    if tile_m is None:
        tile_m = _pick_tile_m(n_rows, dim, hid, chunk, budget, weight_bufs=1)
    else:
        if tile_m % 8 != 0:
            raise ValueError("tile_m must be a multiple of 8")
        est = _vmem_estimate(tile_m, dim, hid, chunk, weight_bufs=1)
        if est > budget:
            raise ValueError(
                f"tile_m={tile_m} needs ~{est} bytes of VMEM, over this TPU "
                f"generation's budget of {budget} bytes; lower tile_m or pass "
                "tile_m=None to auto-select.")

    args = (x2,
            kparams["ln_g"], kparams["ln_b"],
            kparams["wab"], kparams["bab"],
            kparams["wo"], kparams["bo"])

    try:
        out = _build_transition_call(n_rows, dim, hid, tile_m, chunk,
                                     budget, x.dtype,
                                     single_buffer_weights=True)(*args)
    except Exception:
        # Fallback for JAX builds that reject pl.Buffered(1) single-buffering.
        out = _build_transition_call(n_rows, dim, hid, tile_m, chunk,
                                     budget, x.dtype,
                                     single_buffer_weights=False)(*args)
    return out.reshape(orig_shape)


# --------------------------------------------------------------------------
# Parameters
# --------------------------------------------------------------------------
def init_transition_params(key, dim, n):
    """Deterministic synthetic init.  Shapes mirror the PyTorch module.
    NOTE: the reference module's Linear uses custom init='relu'/'final'
    schemes; init is an init-time detail only, forward semantics match."""
    hid = dim * n
    ks = jax.random.split(key, 3)
    f32 = jnp.float32
    return {
        "ln_g": jnp.ones((1, dim), f32),
        "ln_b": jnp.zeros((1, dim), f32),
        "wa": jax.random.normal(ks[0], (dim, hid), f32) * (2.0 / dim) ** 0.5,
        "ba": jnp.zeros((1, hid), f32),
        "wb": jax.random.normal(ks[1], (dim, hid), f32) * (1.0 / dim) ** 0.5,
        "bb": jnp.zeros((1, hid), f32),
        "wo": jax.random.normal(ks[2], (hid, dim), f32) * 0.02,
        "bo": jnp.zeros((1, dim), f32),
    }


def pack_params(params):
    """Pack wa|wb into one (D, 2H) weight, pad H to a multiple of 128 (so the
    in-kernel a|b split is lane-aligned; padded columns/rows are zero and
    contribute nothing), and cast matmul weights to bf16 once, outside the
    kernel.  Biases / LN params stay f32."""
    wa, wb = params["wa"], params["wb"]
    ba, bb = params["ba"], params["bb"]
    wo = params["wo"]
    hid = wa.shape[1]
    hid_pad = ((hid + 127) // 128) * 128
    if hid_pad != hid:
        p = hid_pad - hid
        wa = jnp.pad(wa, ((0, 0), (0, p)))
        wb = jnp.pad(wb, ((0, 0), (0, p)))
        ba = jnp.pad(ba, ((0, 0), (0, p)))
        bb = jnp.pad(bb, ((0, 0), (0, p)))
        wo = jnp.pad(wo, ((0, p), (0, 0)))
    wab = jnp.concatenate([wa, wb], axis=1)
    bab = jnp.concatenate([ba, bb], axis=1)
    return {
        "ln_g": params["ln_g"].astype(jnp.float32),
        "ln_b": params["ln_b"].astype(jnp.float32),
        "wab": wab.astype(jnp.bfloat16),
        "bab": bab.astype(jnp.float32),
        "wo": wo.astype(jnp.bfloat16),
        "bo": params["bo"].astype(jnp.float32),
    }


def transition_reference(x, params):
    """Pure-JAX f32 reference for correctness checking."""
    mu = jnp.mean(x, axis=-1, keepdims=True)
    var = jnp.mean((x - mu) ** 2, axis=-1, keepdims=True)
    xn = (x - mu) * jax.lax.rsqrt(var + 1e-5)
    xn = xn * params["ln_g"][0] + params["ln_b"][0]
    a = xn @ params["wa"] + params["ba"][0]
    b = xn @ params["wb"] + params["bb"][0]
    h = jax.nn.silu(a) * b
    return h @ params["wo"] + params["bo"][0]


if __name__ == "__main__":
    # Small shapes: batch=2, seq=8, dim=32, n=4 -> hidden=128, rows M=16.
    B, S, DIM, N = 2, 8, 32, 4
    key = jax.random.PRNGKey(0)
    kx, kp = jax.random.split(key)
    x = jax.random.normal(kx, (B, S, DIM), jnp.float32)

    params = init_transition_params(kp, DIM, N)
    kparams = pack_params(params)

    y = transition_pallas(x, kparams)          # tile_m auto-selected
    y = jax.block_until_ready(y)

    y_ref = transition_reference(x, params)
    assert y.shape == (B, S, DIM)
    # bf16 weights/activations into the MXU -> relaxed tolerance vs f32 reference.
    assert jnp.allclose(y, y_ref, atol=2e-2, rtol=2e-2), (
        float(jnp.max(jnp.abs(y - y_ref))))

    print("KERNEL_OK")
</pallas_src>

<mosaic_0001>
module attributes {stable_mosaic.version = 11 : i64} {
  func.func @_transition_kernel(%arg0: i32, %arg1: memref<16x32xf32, #tpu.memory_space<vmem>>, %arg2: memref<1x32xf32, #tpu.memory_space<vmem>>, %arg3: memref<1x32xf32, #tpu.memory_space<vmem>>, %arg4: memref<32x256xbf16, #tpu.memory_space<vmem>>, %arg5: memref<1x256xf32, #tpu.memory_space<vmem>>, %arg6: memref<128x32xbf16, #tpu.memory_space<vmem>>, %arg7: memref<1x32xf32, #tpu.memory_space<vmem>>, %arg8: memref<16x32xf32, #tpu.memory_space<vmem>>) attributes {dimension_semantics = [#tpu.dimension_semantics<parallel>], iteration_bounds = array<i64: 1>, scalar_prefetch = 0 : i64, scratch_operands = 0 : i64, tpu.core_type = #tpu.core_type<tc>, window_params = [{transform_indices = @transform_0, window_bounds = array<i64: 16, 32>}, {pipeline_mode = #tpu.pipeline_mode<synchronous>, transform_indices = @transform_1, window_bounds = array<i64: 1, 32>}, {pipeline_mode = #tpu.pipeline_mode<synchronous>, transform_indices = @transform_2, window_bounds = array<i64: 1, 32>}, {pipeline_mode = #tpu.pipeline_mode<synchronous>, transform_indices = @transform_3, window_bounds = array<i64: 32, 256>}, {pipeline_mode = #tpu.pipeline_mode<synchronous>, transform_indices = @transform_4, window_bounds = array<i64: 1, 256>}, {pipeline_mode = #tpu.pipeline_mode<synchronous>, transform_indices = @transform_5, window_bounds = array<i64: 128, 32>}, {pipeline_mode = #tpu.pipeline_mode<synchronous>, transform_indices = @transform_6, window_bounds = array<i64: 1, 32>}, {transform_indices = @transform_7, window_bounds = array<i64: 16, 32>}]} {
    %c0 = arith.constant 0 : index
    %c0_0 = arith.constant 0 : index
    %0 = vector.load %arg1[%c0, %c0_0] : memref<16x32xf32, #tpu.memory_space<vmem>>, vector<16x32xf32>
    %cst = arith.constant dense<0.000000e+00> : vector<16xf32>
    %1 = vector.multi_reduction <add>, %0, %cst [1] : vector<16x32xf32> to vector<16xf32>
    %2 = vector.shape_cast %1 : vector<16xf32> to vector<16x1xf32>
    %cst_1 = arith.constant 3.200000e+01 : f32
    %3 = vector.broadcast %cst_1 : f32 to vector<16x1xf32>
    %4 = arith.divf %2, %3 : vector<16x1xf32>
    %5 = vector.broadcast %4 : vector<16x1xf32> to vector<16x32xf32>
    %6 = arith.subf %0, %5 : vector<16x32xf32>
    %7 = arith.mulf %6, %6 : vector<16x32xf32>
    %cst_2 = arith.constant dense<0.000000e+00> : vector<16xf32>
    %8 = vector.multi_reduction <add>, %7, %cst_2 [1] : vector<16x32xf32> to vector<16xf32>
    %9 = vector.shape_cast %8 : vector<16xf32> to vector<16x1xf32>
    %cst_3 = arith.constant 3.200000e+01 : f32
    %10 = vector.broadcast %cst_3 : f32 to vector<16x1xf32>
    %11 = arith.divf %9, %10 : vector<16x1xf32>
    %cst_4 = arith.constant 9.99999974E-6 : f32
    %12 = vector.broadcast %cst_4 : f32 to vector<16x1xf32>
    %13 = arith.addf %11, %12 : vector<16x1xf32>
    %14 = math.rsqrt %13 : vector<16x1xf32>
    %15 = vector.broadcast %14 : vector<16x1xf32> to vector<16x32xf32>
    %16 = arith.mulf %6, %15 : vector<16x32xf32>
    %c0_5 = arith.constant 0 : index
    %c0_6 = arith.constant 0 : index
    %17 = vector.load %arg2[%c0_5, %c0_6] : memref<1x32xf32, #tpu.memory_space<vmem>>, vector<1x32xf32>
    %18 = vector.broadcast %17 : vector<1x32xf32> to vector<16x32xf32>
    %19 = arith.mulf %16, %18 : vector<16x32xf32>
    %c0_7 = arith.constant 0 : index
    %c0_8 = arith.constant 0 : index
    %20 = vector.load %arg3[%c0_7, %c0_8] : memref<1x32xf32, #tpu.memory_space<vmem>>, vector<1x32xf32>
    %21 = vector.broadcast %20 : vector<1x32xf32> to vector<16x32xf32>
    %22 = arith.addf %19, %21 : vector<16x32xf32>
    %23 = arith.truncf %22 : vector<16x32xf32> to vector<16x32xbf16>
    %c0_9 = arith.constant 0 : index
    %c0_10 = arith.constant 0 : index
    %24 = vector.load %arg4[%c0_9, %c0_10] : memref<32x256xbf16, #tpu.memory_space<vmem>>, vector<32x128xbf16>
    %cst_11 = arith.constant dense<0.000000e+00> : vector<16x128xf32>
    %25 = tpu.matmul %23, %24, %cst_11 {dimension_numbers = #tpu.dot_dimension_numbers<[1], [0], [0], [1], [0, 0, 1, 1], [], []>} : vector<16x32xbf16>, vector<32x128xbf16>, vector<16x128xf32> -> vector<16x128xf32>
    %c0_12 = arith.constant 0 : index
    %c0_13 = arith.constant 0 : index
    %26 = vector.load %arg5[%c0_12, %c0_13] : memref<1x256xf32, #tpu.memory_space<vmem>>, vector<1x128xf32>
    %27 = vector.broadcast %26 : vector<1x128xf32> to vector<16x128xf32>
    %28 = arith.addf %25, %27 : vector<16x128xf32>
    %c0_14 = arith.constant 0 : index
    %c128 = arith.constant 128 : index
    %29 = vector.load %arg4[%c0_14, %c128] : memref<32x256xbf16, #tpu.memory_space<vmem>>, vector<32x128xbf16>
    %cst_15 = arith.constant dense<0.000000e+00> : vector<16x128xf32>
    %30 = tpu.matmul %23, %29, %cst_15 {dimension_numbers = #tpu.dot_dimension_numbers<[1], [0], [0], [1], [0, 0, 1, 1], [], []>} : vector<16x32xbf16>, vector<32x128xbf16>, vector<16x128xf32> -> vector<16x128xf32>
    %c0_16 = arith.constant 0 : index
    %c128_17 = arith.constant 128 : index
    %31 = vector.load %arg5[%c0_16, %c128_17] : memref<1x256xf32, #tpu.memory_space<vmem>>, vector<1x128xf32>
    %32 = vector.broadcast %31 : vector<1x128xf32> to vector<16x128xf32>
    %33 = arith.addf %30, %32 : vector<16x128xf32>
    %34 = arith.negf %28 : vector<16x128xf32>
    %35 = math.exp %34 : vector<16x128xf32>
    %cst_18 = arith.constant 1.000000e+00 : f32
    %36 = vector.broadcast %cst_18 : f32 to vector<16x128xf32>
    %37 = arith.addf %36, %35 : vector<16x128xf32>
    %38 = arith.divf %36, %37 : vector<16x128xf32>
    %39 = arith.mulf %28, %38 : vector<16x128xf32>
    %40 = arith.mulf %39, %33 : vector<16x128xf32>
    %41 = arith.truncf %40 : vector<16x128xf32> to vector<16x128xbf16>
    %c0_19 = arith.constant 0 : index
    %c0_20 = arith.constant 0 : index
    %42 = vector.load %arg6[%c0_19, %c0_20] : memref<128x32xbf16, #tpu.memory_space<vmem>>, vector<128x32xbf16>
    %cst_21 = arith.constant dense<0.000000e+00> : vector<16x32xf32>
    %43 = tpu.matmul %41, %42, %cst_21 {dimension_numbers = #tpu.dot_dimension_numbers<[1], [0], [0], [1], [0, 0, 1, 1], [], []>} : vector<16x128xbf16>, vector<128x32xbf16>, vector<16x32xf32> -> vector<16x32xf32>
    %c0_22 = arith.constant 0 : index
    %c0_23 = arith.constant 0 : index
    %44 = vector.load %arg7[%c0_22, %c0_23] : memref<1x32xf32, #tpu.memory_space<vmem>>, vector<1x32xf32>
    %45 = vector.broadcast %44 : vector<1x32xf32> to vector<16x32xf32>
    %46 = arith.addf %43, %45 : vector<16x32xf32>
    %c0_24 = arith.constant 0 : index
    %c0_25 = arith.constant 0 : index
    %47 = vector.load %arg8[%c0_24, %c0_25] : memref<16x32xf32, #tpu.memory_space<vmem>>, vector<16x32xf32>
    tpu.vector_store %arg8[%c0_24, %c0_25], %46 {strides = array<i32>} : memref<16x32xf32, #tpu.memory_space<vmem>>, vector<16x32xf32>,
    return
  }
  func.func @transform_0(%arg0: i32) -> (i32, i32) {
    %c0_i32 = arith.constant 0 : i32
    %c0_i32_0 = arith.constant 0 : i32
    return %arg0, %c0_i32 : i32, i32
  }
  func.func @transform_1(%arg0: i32) -> (i32, i32) {
    %c0_i32 = arith.constant 0 : i32
    %c0_i32_0 = arith.constant 0 : i32
    %c0_i32_1 = arith.constant 0 : i32
    return %c0_i32, %c0_i32_0 : i32, i32
  }
  func.func @transform_2(%arg0: i32) -> (i32, i32) {
    %c0_i32 = arith.constant 0 : i32
    %c0_i32_0 = arith.constant 0 : i32
    %c0_i32_1 = arith.constant 0 : i32
    return %c0_i32, %c0_i32_0 : i32, i32
  }
  func.func @transform_3(%arg0: i32) -> (i32, i32) {
    %c0_i32 = arith.constant 0 : i32
    %c0_i32_0 = arith.constant 0 : i32
    %c0_i32_1 = arith.constant 0 : i32
    return %c0_i32, %c0_i32_0 : i32, i32
  }
  func.func @transform_4(%arg0: i32) -> (i32, i32) {
    %c0_i32 = arith.constant 0 : i32
    %c0_i32_0 = arith.constant 0 : i32
    %c0_i32_1 = arith.constant 0 : i32
    return %c0_i32, %c0_i32_0 : i32, i32
  }
  func.func @transform_5(%arg0: i32) -> (i32, i32) {
    %c0_i32 = arith.constant 0 : i32
    %c0_i32_0 = arith.constant 0 : i32
    %c0_i32_1 = arith.constant 0 : i32
    return %c0_i32, %c0_i32_0 : i32, i32
  }
  func.func @transform_6(%arg0: i32) -> (i32, i32) {
    %c0_i32 = arith.constant 0 : i32
    %c0_i32_0 = arith.constant 0 : i32
    %c0_i32_1 = arith.constant 0 : i32
    return %c0_i32, %c0_i32_0 : i32, i32
  }
  func.func @transform_7(%arg0: i32) -> (i32, i32) {
    %c0_i32 = arith.constant 0 : i32
    %c0_i32_0 = arith.constant 0 : i32
    return %arg0, %c0_i32 : i32, i32
  }
}

module attributes {stable_mosaic.version = 11 : i64} {
  func.func @_transition_kernel(%arg0: i32, %arg1: memref<16x32xf32, #tpu.memory_space<vmem>>, %arg2: memref<1x32xf32, #tpu.memory_space<vmem>>, %arg3: memref<1x32xf32, #tpu.memory_space<vmem>>, %arg4: memref<32x256xbf16, #tpu.memory_space<vmem>>, %arg5: memref<1x256xf32, #tpu.memory_space<vmem>>, %arg6: memref<128x32xbf16, #tpu.memory_space<vmem>>, %arg7: memref<1x32xf32, #tpu.memory_space<vmem>>, %arg8: memref<16x32xf32, #tpu.memory_space<vmem>>) attributes {dimension_semantics = [#tpu.dimension_semantics<parallel>], iteration_bounds = array<i64: 1>, scalar_prefetch = 0 : i64, scratch_operands = 0 : i64, tpu.core_type = #tpu.core_type<tc>, window_params = [{transform_indices = @transform_0, window_bounds = array<i64: 16, 32>}, {pipeline_mode = #tpu.pipeline_mode<synchronous>, transform_indices = @transform_1, window_bounds = array<i64: 1, 32>}, {pipeline_mode = #tpu.pipeline_mode<synchronous>, transform_indices = @transform_2, window_bounds = array<i64: 1, 32>}, {pipeline_mode = #tpu.pipeline_mode<synchronous>, transform_indices = @transform_3, window_bounds = array<i64: 32, 256>}, {pipeline_mode = #tpu.pipeline_mode<synchronous>, transform_indices = @transform_4, window_bounds = array<i64: 1, 256>}, {pipeline_mode = #tpu.pipeline_mode<synchronous>, transform_indices = @transform_5, window_bounds = array<i64: 128, 32>}, {pipeline_mode = #tpu.pipeline_mode<synchronous>, transform_indices = @transform_6, window_bounds = array<i64: 1, 32>}, {transform_indices = @transform_7, window_bounds = array<i64: 16, 32>}]} {
    %c0 = arith.constant 0 : index
    %c0_0 = arith.constant 0 : index
    %0 = vector.load %arg1[%c0, %c0_0] : memref<16x32xf32, #tpu.memory_space<vmem>>, vector<16x32xf32>
    %cst = arith.constant dense<0.000000e+00> : vector<16xf32>
    %1 = vector.multi_reduction <add>, %0, %cst [1] : vector<16x32xf32> to vector<16xf32>
    %2 = vector.shape_cast %1 : vector<16xf32> to vector<16x1xf32>
    %cst_1 = arith.constant 3.200000e+01 : f32
    %3 = vector.broadcast %cst_1 : f32 to vector<16x1xf32>
    %4 = arith.divf %2, %3 : vector<16x1xf32>
    %5 = vector.broadcast %4 : vector<16x1xf32> to vector<16x32xf32>
    %6 = arith.subf %0, %5 : vector<16x32xf32>
    %7 = arith.mulf %6, %6 : vector<16x32xf32>
    %cst_2 = arith.constant dense<0.000000e+00> : vector<16xf32>
    %8 = vector.multi_reduction <add>, %7, %cst_2 [1] : vector<16x32xf32> to vector<16xf32>
    %9 = vector.shape_cast %8 : vector<16xf32> to vector<16x1xf32>
    %cst_3 = arith.constant 3.200000e+01 : f32
    %10 = vector.broadcast %cst_3 : f32 to vector<16x1xf32>
    %11 = arith.divf %9, %10 : vector<16x1xf32>
    %cst_4 = arith.constant 9.99999974E-6 : f32
    %12 = vector.broadcast %cst_4 : f32 to vector<16x1xf32>
    %13 = arith.addf %11, %12 : vector<16x1xf32>
    %14 = math.rsqrt %13 : vector<16x1xf32>
    %15 = vector.broadcast %14 : vector<16x1xf32> to vector<16x32xf32>
    %16 = arith.mulf %6, %15 : vector<16x32xf32>
    %c0_5 = arith.constant 0 : index
    %c0_6 = arith.constant 0 : index
    %17 = vector.load %arg2[%c0_5, %c0_6] : memref<1x32xf32, #tpu.memory_space<vmem>>, vector<1x32xf32>
    %18 = vector.broadcast %17 : vector<1x32xf32> to vector<16x32xf32>
    %19 = arith.mulf %16, %18 : vector<16x32xf32>
    %c0_7 = arith.constant 0 : index
    %c0_8 = arith.constant 0 : index
    %20 = vector.load %arg3[%c0_7, %c0_8] : memref<1x32xf32, #tpu.memory_space<vmem>>, vector<1x32xf32>
    %21 = vector.broadcast %20 : vector<1x32xf32> to vector<16x32xf32>
    %22 = arith.addf %19, %21 : vector<16x32xf32>
    %23 = arith.truncf %22 : vector<16x32xf32> to vector<16x32xbf16>
    %c0_9 = arith.constant 0 : index
    %c0_10 = arith.constant 0 : index
    %24 = vector.load %arg4[%c0_9, %c0_10] : memref<32x256xbf16, #tpu.memory_space<vmem>>, vector<32x128xbf16>
    %cst_11 = arith.constant dense<0.000000e+00> : vector<16x128xf32>
    %25 = tpu.matmul %23, %24, %cst_11 {dimension_numbers = #tpu.dot_dimension_numbers<[1], [0], [0], [1], [0, 0, 1, 1], [], []>} : vector<16x32xbf16>, vector<32x128xbf16>, vector<16x128xf32> -> vector<16x128xf32>
    %c0_12 = arith.constant 0 : index
    %c0_13 = arith.constant 0 : index
    %26 = vector.load %arg5[%c0_12, %c0_13] : memref<1x256xf32, #tpu.memory_space<vmem>>, vector<1x128xf32>
    %27 = vector.broadcast %26 : vector<1x128xf32> to vector<16x128xf32>
    %28 = arith.addf %25, %27 : vector<16x128xf32>
    %c0_14 = arith.constant 0 : index
    %c128 = arith.constant 128 : index
    %29 = vector.load %arg4[%c0_14, %c128] : memref<32x256xbf16, #tpu.memory_space<vmem>>, vector<32x128xbf16>
    %cst_15 = arith.constant dense<0.000000e+00> : vector<16x128xf32>
    %30 = tpu.matmul %23, %29, %cst_15 {dimension_numbers = #tpu.dot_dimension_numbers<[1], [0], [0], [1], [0, 0, 1, 1], [], []>} : vector<16x32xbf16>, vector<32x128xbf16>, vector<16x128xf32> -> vector<16x128xf32>
    %c0_16 = arith.constant 0 : index
    %c128_17 = arith.constant 128 : index
    %31 = vector.load %arg5[%c0_16, %c128_17] : memref<1x256xf32, #tpu.memory_space<vmem>>, vector<1x128xf32>
    %32 = vector.broadcast %31 : vector<1x128xf32> to vector<16x128xf32>
    %33 = arith.addf %30, %32 : vector<16x128xf32>
    %34 = arith.negf %28 : vector<16x128xf32>
    %35 = math.exp %34 : vector<16x128xf32>
    %cst_18 = arith.constant 1.000000e+00 : f32
    %36 = vector.broadcast %cst_18 : f32 to vector<16x128xf32>
    %37 = arith.addf %36, %35 : vector<16x128xf32>
    %38 = arith.divf %36, %37 : vector<16x128xf32>
    %39 = arith.mulf %28, %38 : vector<16x128xf32>
    %40 = arith.mulf %39, %33 : vector<16x128xf32>
    %41 = arith.truncf %40 : vector<16x128xf32> to vector<16x128xbf16>
    %c0_19 = arith.constant 0 : index
    %c0_20 = arith.constant 0 : index
    %42 = vector.load %arg6[%c0_19, %c0_20] : memref<128x32xbf16, #tpu.memory_space<vmem>>, vector<128x32xbf16>
    %cst_21 = arith.constant dense<0.000000e+00> : vector<16x32xf32>
    %43 = tpu.matmul %41, %42, %cst_21 {dimension_numbers = #tpu.dot_dimension_numbers<[1], [0], [0], [1], [0, 0, 1, 1], [], []>} : vector<16x128xbf16>, vector<128x32xbf16>, vector<16x32xf32> -> vector<16x32xf32>
    %c0_22 = arith.constant 0 : index
    %c0_23 = arith.constant 0 : index
    %44 = vector.load %arg7[%c0_22, %c0_23] : memref<1x32xf32, #tpu.memory_space<vmem>>, vector<1x32xf32>
    %45 = vector.broadcast %44 : vector<1x32xf32> to vector<16x32xf32>
    %46 = arith.addf %43, %45 : vector<16x32xf32>
    %c0_24 = arith.constant 0 : index
    %c0_25 = arith.constant 0 : index
    %47 = vector.load %arg8[%c0_24, %c0_25] : memref<16x32xf32, #tpu.memory_space<vmem>>, vector<16x32xf32>
    tpu.vector_store %arg8[%c0_24, %c0_25], %46 {strides = array<i32>} : memref<16x32xf32, #tpu.memory_space<vmem>>, vector<16x32xf32>,
    return
  }
  func.func @transform_0(%arg0: i32) -> (i32, i32) {
    %c0_i32 = arith.constant 0 : i32
    %c0_i32_0 = arith.constant 0 : i32
    return %arg0, %c0_i32 : i32, i32
  }
  func.func @transform_1(%arg0: i32) -> (i32, i32) {
    %c0_i32 = arith.constant 0 : i32
    %c0_i32_0 = arith.constant 0 : i32
    %c0_i32_1 = arith.constant 0 : i32
    return %c0_i32, %c0_i32_0 : i32, i32
  }
  func.func @transform_2(%arg0: i32) -> (i32, i32) {
    %c0_i32 = arith.constant 0 : i32
    %c0_i32_0 = arith.constant 0 : i32
    %c0_i32_1 = arith.constant 0 : i32
    return %c0_i32, %c0_i32_0 : i32, i32
  }
  func.func @transform_3(%arg0: i32) -> (i32, i32) {
    %c0_i32 = arith.constant 0 : i32
    %c0_i32_0 = arith.constant 0 : i32
    %c0_i32_1 = arith.constant 0 : i32
    return %c0_i32, %c0_i32_0 : i32, i32
  }
  func.func @transform_4(%arg0: i32) -> (i32, i32) {
    %c0_i32 = arith.constant 0 : i32
    %c0_i32_0 = arith.constant 0 : i32
    %c0_i32_1 = arith.constant 0 : i32
    return %c0_i32, %c0_i32_0 : i32, i32
  }
  func.func @transform_5(%arg0: i32) -> (i32, i32) {
    %c0_i32 = arith.constant 0 : i32
    %c0_i32_0 = arith.constant 0 : i32
    %c0_i32_1 = arith.constant 0 : i32
    return %c0_i32, %c0_i32_0 : i32, i32
  }
  func.func @transform_6(%arg0: i32) -> (i32, i32) {
    %c0_i32 = arith.constant 0 : i32
    %c0_i32_0 = arith.constant 0 : i32
    %c0_i32_1 = arith.constant 0 : i32
    return %c0_i32, %c0_i32_0 : i32, i32
  }
  func.func @transform_7(%arg0: i32) -> (i32, i32) {
    %c0_i32 = arith.constant 0 : i32
    %c0_i32_0 = arith.constant 0 : i32
    return %arg0, %c0_i32 : i32, i32
  }
}

</mosaic_0001>

<llo_original>
// kernel: tpu_custom_call.1
$region0: #{tpu_custom_call.1}
  #allocation0 [shape = 'u32[]', space=smem, size = 0x4, offset = 0x4, fixed_abs, tag = 'smem constant byte address 0x4 - core index']
  #allocation1 [shape = 'u32[144,128]{1,0:T(1,128)}', space=vmem, size = 0x12000, scoped, tag = 'internal scratch']
  %s0 = inlined_call_operand.vmem [shape: f32[16,32], index: 0, kind: input, shape index: {}]
  %s1 = inlined_call_operand.vmem [shape: f32[1,32], index: 1, kind: input, shape index: {}]
  %s2 = inlined_call_operand.vmem [shape: f32[1,32], index: 2, kind: input, shape index: {}]
  %s3 = inlined_call_operand.vmem [shape: bf16[32,256], index: 3, kind: input, shape index: {}]
  %s4 = inlined_call_operand.vmem [shape: f32[1,256], index: 4, kind: input, shape index: {}]
  %s5 = inlined_call_operand.vmem [shape: bf16[128,32], index: 5, kind: input, shape index: {}]
  %s6 = inlined_call_operand.vmem [shape: f32[1,32], index: 6, kind: input, shape index: {}]
  %s7 = inlined_call_operand.hbm [shape: f32[16,32], index: 7, kind: output, shape index: {}]
  %s8 = sld [smem:[#allocation0]]
  $region38: #{tpu_custom_call.1} parent=0
    _
  %s10 = ssub.s32 1, %s8
  %s11 = scalar_select 0, %s10, %s8
  $region1: #{tpu_custom_call.1} parent=0
    #allocation2 [shape = 'u8[8192]{0}', space=vmem, size = 0x2000, scoped, tag = 'output window, operand 0, single buffered']
    #allocation3 [shape = 's32[1]{0}', space=sflag, size = 0x4, scoped, tag = 'scoped memory for tpu_custom_call.1']
    %12 = vsyncpa [#allocation3], 0
    // Predicated region
    $region2: #{tpu_custom_call.1} parent=1 // pred_check
      _
    $region3: #{tpu_custom_call.1} parent=1 // pred_check_branch
      %14 = sbr.rel (0) target = $region5
    $region4: #{tpu_custom_call.1} parent=1 // pred_region
      _
    $region5: #{tpu_custom_call.1} parent=1 // pred_fallthru
      _
    // Predicated region
    $region6: #{tpu_custom_call.1} parent=1 // pred_check
      _
    $region7: #{tpu_custom_call.1} parent=1 // pred_check_branch
      %16 = sbr.rel (0) target = $region9
    $region8: #{tpu_custom_call.1} parent=1 // pred_region
      _
    $region9: #{tpu_custom_call.1} parent=1 // pred_fallthru
      _
    // Predicated region
    $region10: #{tpu_custom_call.1} parent=1 // pred_check
      _
    $region11: #{tpu_custom_call.1} parent=1 // pred_check_branch
      %18 = sbr.rel (0) target = $region13
    $region12: #{tpu_custom_call.1} parent=1 // pred_region
      _
    $region13: #{tpu_custom_call.1} parent=1 // pred_fallthru
      _
    // Predicated region
    $region14: #{tpu_custom_call.1} parent=1 // pred_check
      _
    $region15: #{tpu_custom_call.1} parent=1 // pred_check_branch
      %20 = sbr.rel (0) target = $region17
    $region16: #{tpu_custom_call.1} parent=1 // pred_region
      _
    $region17: #{tpu_custom_call.1} parent=1 // pred_fallthru
      _
    // Predicated region
    $region18: #{tpu_custom_call.1} parent=1 // pred_check
      _
    $region19: #{tpu_custom_call.1} parent=1 // pred_check_branch
      %22 = sbr.rel (0) target = $region21
    $region20: #{tpu_custom_call.1} parent=1 // pred_region
      _
    $region21: #{tpu_custom_call.1} parent=1 // pred_fallthru
      _
    // Predicated region
    $region22: #{tpu_custom_call.1} parent=1 // pred_check
      _
    $region23: #{tpu_custom_call.1} parent=1 // pred_check_branch
      %24 = sbr.rel (0) target = $region25
    $region24: #{tpu_custom_call.1} parent=1 // pred_region
      _
    $region25: #{tpu_custom_call.1} parent=1 // pred_fallthru
      _
    // Predicated region
    $region26: #{tpu_custom_call.1} parent=1 // pred_check
      _
    $region27: #{tpu_custom_call.1} parent=1 // pred_check_branch
      %26 = sbr.rel (0) target = $region29
    $region28: #{tpu_custom_call.1} parent=1 // pred_region
      _
    $region29: #{tpu_custom_call.1} parent=1 // pred_fallthru
      _
    %v28 = vld [vmem:[%s0] sm:$0xff]
    %v29 = vld [vmem:[%s0 + $0x8] sm:$0xff]
    %vm30 = vcmask 261120
    %v31 = vsel %vm30, %v28, 0.0
    %32 = vadd.xlane.f32.xlu0 %v31
    %v33 = vpop.xlane.xlu0 %32
    %v34 = vsel %vm30, %v29, 0.0
    %35 = vadd.xlane.f32.xlu0 %v34
    %v36 = vpop.xlane.xlu0 %35
    %v37 = vrcp.pop 32.0
    %v38 = vmul.f32 %v33, %v37
    %v39 = vmul.f32 %v36, %v37
    %v40 = vsub.f32 %v28, %v38
    %v41 = vsub.f32 %v29, %v39
    %v42 = vmul.f32 %v40, %v40
    %v43 = vmul.f32 %v41, %v41
    %v44 = vsel %vm30, %v42, 0.0
    %45 = vadd.xlane.f32.xlu0 %v44
    %v46 = vpop.xlane.xlu0 %45
    %v47 = vsel %vm30, %v43, 0.0
    %48 = vadd.xlane.f32.xlu0 %v47
    %v49 = vpop.xlane.xlu0 %48
    %v50 = vmul.f32 %v46, %v37
    %v51 = vmul.f32 %v49, %v37
    %v52 = vadd.f32 %v50, 1e-05
    %v53 = vadd.f32 %v51, 1e-05
    %v54 = vrsqrt.pop %v52
    %v55 = vrsqrt.pop %v53
    %v56 = vmul.f32 %v40, %v54
    %v57 = vmul.f32 %v41, %v55
    %v58 = vld [vmem:[%s1] sm:$0x1]
    %v60 = vlaneseq
    %v61 = vshrl.u32 %v60, 7
    %v62 = vsub.s32 0, %v61
    %v63 = vrot.slane %v58, %v62
    %v65 = vmul.f32 %v56, %v63
    %v66 = vmul.f32 %v57, %v63
    %v67 = vld [vmem:[%s2] sm:$0x1]
    %v69 = vlaneseq
    %v70 = vshrl.u32 %v69, 7
    %v71 = vsub.s32 0, %v70
    %v72 = vrot.slane %v67, %v71
    %v74 = vadd.f32 %v65, %v72
    %v75 = vadd.f32 %v66, %v72
    %v76 = vpack.c.bf16 %v75, %v74
    %v77 = vld [vmem:[%s3] sm:$0xf]
    %v78 = vld [vmem:[%s3 + $0x8] sm:$0xf]
    %v79 = vld [vmem:[%s3 + $0x10] sm:$0xf]
    %v80 = vld [vmem:[%s3 + $0x18] sm:$0xf]
    %v81 = vld [vmem:[%s4] sm:$0x1]
    %v83 = vlaneseq
    %v84 = vshrl.u32 %v83, 7
    %v85 = vsub.s32 0, %v84
    %v86 = vrot.slane %v81, %v85
    %v92 = vunpack.c.l.b16 %v77
    %v93 = vunpack.c.l.b16 %v78
    %v94 = vunpack.c.l.b16 %v79
    %v95 = vunpack.c.l.b16 %v80
    %v96 = vpack.c.b16 %v93, %v92
    %v97 = vpack.c.b16 %v95, %v94
    %v101 = vsel %vm30, %v76, 0
    %103 = vmatprep.subr.bf16.mxu0 0
    %104 = vmatpush1.bf16.msra.mxu0 0
    %105 = vmatprep.subr.bf16.mxu0 0
    %106 = vmatpush1.bf16.msra.mxu0 0
    %107 = vmatprep.subr.bf16.mxu0 0
    %108 = vmatpush1.bf16.msra.mxu0 0
    %109 = vmatprep.subr.bf16.mxu0 0
    %110 = vmatpush1.bf16.msra.mxu0 0
    %111 = vmatprep.subr.bf16.mxu0 0
    %112 = vmatpush1.bf16.msra.mxu0 0
    %113 = vmatprep.subr.bf16.mxu0 0
    %114 = vmatpush1.bf16.msra.mxu0 0
    %115 = vmatprep.subr.bf16.mxu0 0
    %116 = vmatpush1.bf16.msra.mxu0 %v97
    %117 = vmatprep.subr.bf16.mxu0 0
    %118 = vmatpush1.bf16.msra.mxu0 %v96
    %119 = vmatprep.subr.bf16.mxu0 0
    %120 = vmatpush2.bf16.msra.mxu0 0
    %121 = vmatprep.subr.bf16.mxu0 0
    %122 = vmatpush2.bf16.msra.mxu0 0
    %123 = vmatprep.subr.bf16.mxu0 0
    %124 = vmatpush2.bf16.msra.mxu0 0
    %125 = vmatprep.subr.bf16.mxu0 0
    %126 = vmatpush2.bf16.msra.mxu0 0
    %127 = vmatprep.subr.bf16.mxu0 0
    %128 = vmatpush2.bf16.msra.mxu0 0
    %129 = vmatprep.subr.bf16.mxu0 0
    %130 = vmatpush2.bf16.msra.mxu0 0
    %131 = vmatprep.subr.bf16.mxu0 0
    %132 = vmatpush2.bf16.msra.mxu0 0
    %133 = vmatprep.subr.bf16.mxu0 0
    %134 = vmatpush2.bf16.msra.mxu0 0
    %135 = vmatprep.mubr.bf16.mxu0 0
    %136 = vmatmul.mubr.bf16.gmra.mxu0 %v101
    %v137 = vpop.f32.mrf.mxu0
    %v138 = vadd.f32 %v86, %v137
    %v139 = vpop.f32.mrf.mxu0
    %v140 = vpop.f32.mrf.mxu0
    %v141 = vadd.f32 %v86, %v140
    %v142 = vpop.f32.mrf.mxu0
    %143 = vdwg.mxu0
    %v144 = vld [vmem:[%s3 + $0x4] sm:$0xf]
    %v145 = vld [vmem:[%s3 + $0xc] sm:$0xf]
    %v146 = vld [vmem:[%s3 + $0x14] sm:$0xf]
    %v147 = vld [vmem:[%s3 + $0x1c] sm:$0xf]
    %v148 = vld [vmem:[%s4 + $0x1] sm:$0x1]
    %v150 = vlaneseq
    %v151 = vshrl.u32 %v150, 7
    %v152 = vsub.s32 0, %v151
    %v153 = vrot.slane %v148, %v152
    %v159 = vunpack.c.l.b16 %v144
    %v160 = vunpack.c.l.b16 %v145
    %v161 = vunpack.c.l.b16 %v146
    %v162 = vunpack.c.l.b16 %v147
    %v163 = vpack.c.b16 %v160, %v159
    %v164 = vpack.c.b16 %v162, %v161
    %167 = vmatprep.subr.bf16.mxu0 0
    %168 = vmatpush1.bf16.msra.mxu0 0
    %169 = vmatprep.subr.bf16.mxu0 0
    %170 = vmatpush1.bf16.msra.mxu0 0
    %171 = vmatprep.subr.bf16.mxu0 0
    %172 = vmatpush1.bf16.msra.mxu0 0
    %173 = vmatprep.subr.bf16.mxu0 0
    %174 = vmatpush1.bf16.msra.mxu0 0
    %175 = vmatprep.subr.bf16.mxu0 0
    %176 = vmatpush1.bf16.msra.mxu0 0
    %177 = vmatprep.subr.bf16.mxu0 0
    %178 = vmatpush1.bf16.msra.mxu0 0
    %179 = vmatprep.subr.bf16.mxu0 0
    %180 = vmatpush1.bf16.msra.mxu0 %v164
    %181 = vmatprep.subr.bf16.mxu0 0
    %182 = vmatpush1.bf16.msra.mxu0 %v163
    %183 = vmatprep.subr.bf16.mxu0 0
    %184 = vmatpush2.bf16.msra.mxu0 0
    %185 = vmatprep.subr.bf16.mxu0 0
    %186 = vmatpush2.bf16.msra.mxu0 0
    %187 = vmatprep.subr.bf16.mxu0 0
    %188 = vmatpush2.bf16.msra.mxu0 0
    %189 = vmatprep.subr.bf16.mxu0 0
    %190 = vmatpush2.bf16.msra.mxu0 0
    %191 = vmatprep.subr.bf16.mxu0 0
    %192 = vmatpush2.bf16.msra.mxu0 0
    %193 = vmatprep.subr.bf16.mxu0 0
    %194 = vmatpush2.bf16.msra.mxu0 0
    %195 = vmatprep.subr.bf16.mxu0 0
    %196 = vmatpush2.bf16.msra.mxu0 0
    %197 = vmatprep.subr.bf16.mxu0 0
    %198 = vmatpush2.bf16.msra.mxu0 0
    %199 = vmatprep.mubr.bf16.mxu0 0
    %200 = vmatmul.mubr.bf16.gmra.mxu0 %v101
    %v201 = vpop.f32.mrf.mxu0
    %v202 = vadd.f32 %v153, %v201
    %v203 = vpop.f32.mrf.mxu0
    %v204 = vpop.f32.mrf.mxu0
    %v205 = vadd.f32 %v153, %v204
    %v206 = vpop.f32.mrf.mxu0
    %207 = vdwg.mxu0
    %v208 = vxor.u32 %v138, 2147483648
    %v209 = vxor.u32 %v141, 2147483648
    %v210 = vmul.f32 %v208, 1.442695
    %v211 = vpow.pop %v210
    %v212 = vmul.f32 %v209, 1.442695
    %v213 = vpow.pop %v212
    %v214 = vadd.f32 %v211, 1.0
    %v215 = vadd.f32 %v213, 1.0
    %v216 = vrcp.pop %v214
    %v217 = vmul.f32 1.0, %v216
    %v218 = vrcp.pop %v215
    %v219 = vmul.f32 1.0, %v218
    %v220 = vmul.f32 %v138, %v217
    %v221 = vmul.f32 %v141, %v219
    %v222 = vmul.f32 %v220, %v202
    %v223 = vmul.f32 %v221, %v205
    %v224 = vpack.c.bf16 %v223, %v222
    %v225 = vld [vmem:[%s5] sm:$0xf]
    %v226 = vld [vmem:[%s5 + $0x4] sm:$0xf]
    %v227 = vld [vmem:[%s5 + $0x8] sm:$0xf]
    %v228 = vld [vmem:[%s5 + $0xc] sm:$0xf]
    %v229 = vld [vmem:[%s5 + $0x10] sm:$0xf]
    %v230 = vld [vmem:[%s5 + $0x14] sm:$0xf]
    %v231 = vld [vmem:[%s5 + $0x18] sm:$0xf]
    %v232 = vld [vmem:[%s5 + $0x1c] sm:$0xf]
    %v233 = vld [vmem:[%s5 + $0x20] sm:$0xf]
    %v234 = vld [vmem:[%s5 + $0x24] sm:$0xf]
    %v235 = vld [vmem:[%s5 + $0x28] sm:$0xf]
    %v236 = vld [vmem:[%s5 + $0x2c] sm:$0xf]
    %v237 = vld [vmem:[%s5 + $0x30] sm:$0xf]
    %v238 = vld [vmem:[%s5 + $0x34] sm:$0xf]
    %v239 = vld [vmem:[%s5 + $0x38] sm:$0xf]
    %v240 = vld [vmem:[%s5 + $0x3c] sm:$0xf]
    %v241 = vld [vmem:[%s6] sm:$0x1]
    %v243 = vlaneseq
    %v244 = vshrl.u32 %v243, 7
    %v245 = vsub.s32 0, %v244
    %v246 = vrot.slane %v241, %v245
    %v264 = vunpack.c.l.b16 %v225
    %v265 = vunpack.c.l.b16 %v226
    %v266 = vunpack.c.l.b16 %v227
    %v267 = vunpack.c.l.b16 %v228
    %v268 = vunpack.c.l.b16 %v229
    %v269 = vunpack.c.l.b16 %v230
    %v270 = vunpack.c.l.b16 %v231
    %v271 = vunpack.c.l.b16 %v232
    %v272 = vunpack.c.l.b16 %v233
    %v273 = vunpack.c.l.b16 %v234
    %v274 = vunpack.c.l.b16 %v235
    %v275 = vunpack.c.l.b16 %v236
    %v276 = vunpack.c.l.b16 %v237
    %v277 = vunpack.c.l.b16 %v238
    %v278 = vunpack.c.l.b16 %v239
    %v279 = vunpack.c.l.b16 %v240
    %v280 = vpack.c.b16 %v265, %v264
    %v281 = vpack.c.b16 %v267, %v266
    %v282 = vpack.c.b16 %v269, %v268
    %v283 = vpack.c.b16 %v271, %v270
    %v284 = vpack.c.b16 %v273, %v272
    %v285 = vpack.c.b16 %v275, %v274
    %v286 = vpack.c.b16 %v277, %v276
    %v287 = vpack.c.b16 %v279, %v278
    %296 = vmatprep.subr.bf16.mxu0 0
    %297 = vmatpush1.bf16.msra.mxu0 %v287
    %298 = vmatprep.subr.bf16.mxu0 0
    %299 = vmatpush1.bf16.msra.mxu0 %v286
    %300 = vmatprep.subr.bf16.mxu0 0
    %301 = vmatpush1.bf16.msra.mxu0 %v285
    %302 = vmatprep.subr.bf16.mxu0 0
    %303 = vmatpush1.bf16.msra.mxu0 %v284
    %304 = vmatprep.subr.bf16.mxu0 0
    %305 = vmatpush1.bf16.msra.mxu0 %v283
    %306 = vmatprep.subr.bf16.mxu0 0
    %307 = vmatpush1.bf16.msra.mxu0 %v282
    %308 = vmatprep.subr.bf16.mxu0 0
    %309 = vmatpush1.bf16.msra.mxu0 %v281
    %310 = vmatprep.subr.bf16.mxu0 0
    %311 = vmatpush1.bf16.msra.mxu0 %v280
    %312 = vmatprep.subr.bf16.mxu0 0
    %313 = vmatpush2.bf16.msra.mxu0 0
    %314 = vmatprep.subr.bf16.mxu0 0
    %315 = vmatpush2.bf16.msra.mxu0 0
    %316 = vmatprep.subr.bf16.mxu0 0
    %317 = vmatpush2.bf16.msra.mxu0 0
    %318 = vmatprep.subr.bf16.mxu0 0
    %319 = vmatpush2.bf16.msra.mxu0 0
    %320 = vmatprep.subr.bf16.mxu0 0
    %321 = vmatpush2.bf16.msra.mxu0 0
    %322 = vmatprep.subr.bf16.mxu0 0
    %323 = vmatpush2.bf16.msra.mxu0 0
    %324 = vmatprep.subr.bf16.mxu0 0
    %325 = vmatpush2.bf16.msra.mxu0 0
    %326 = vmatprep.subr.bf16.mxu0 0
    %327 = vmatpush2.bf16.msra.mxu0 0
    %328 = vmatprep.mubr.bf16.mxu0 0
    %329 = vmatmul.mubr.bf16.gmra.mxu0 %v224
    %v330 = vpop.f32.mrf.mxu0
    %v331 = vadd.f32 %v246, %v330
    %v332 = vpop.f32.mrf.mxu0
    %v333 = vpop.f32.mrf.mxu0
    %v334 = vadd.f32 %v246, %v333
    %v335 = vpop.f32.mrf.mxu0
    %336 = vdwg.mxu0
    %337 = vst.msk [vmem:[#allocation2] sm:$0xff] %vm30, %v331
    %338 = vst.msk [vmem:[#allocation2 + $0x8] sm:$0xff] %vm30, %v334
    // Predicated region
    $region30: #{tpu_custom_call.1} parent=1 // pred_check
      _
    $region31: #{tpu_custom_call.1} parent=1 // pred_check_branch
      %340 = sbr.rel (0) target = $region33
    $region32: #{tpu_custom_call.1} parent=1 // pred_region
      %s342 = ssub.s32 256, 256
      %343 = vsyncadd [#allocation3], %s342
      %s344 = sshll.u32 [#allocation2], 4
      %s345 = int_to_ptr.vmem [resolvable:$true] %s344
      %350 = dma.vmem_to_hbm [thread:$0]  %s345, 256, %s7, [#allocation3], 128, 128, 8
    $region33: #{tpu_custom_call.1} parent=1 // pred_fallthru
      _
    // Predicated region
    $region34: #{tpu_custom_call.1} parent=1 // pred_check
      _
    $region35: #{tpu_custom_call.1} parent=1 // pred_check_branch
      %352 = sbr.rel (0) target = $region37
    $region36: #{tpu_custom_call.1} parent=1 // pred_region
      %353 = dma.done [#allocation3], 256
    $region37: #{tpu_custom_call.1} parent=1 // pred_fallthru
      _
    %354 = vsyncpa [#allocation3], 1

// kernel: tpu_custom_call.1
$region0: #{tpu_custom_call.1}
  #allocation0 [shape = 'u32[]', space=smem, size = 0x4, offset = 0x4, fixed_abs, tag = 'smem constant byte address 0x4 - core index']
  #allocation1 [shape = 'u32[144,128]{1,0:T(1,128)}', space=vmem, size = 0x12000, scoped, tag = 'internal scratch']
  %s0 = inlined_call_operand.vmem [shape: f32[16,32], index: 0, kind: input, shape index: {}]
  %s1 = inlined_call_operand.vmem [shape: f32[1,32], index: 1, kind: input, shape index: {}]
  %s2 = inlined_call_operand.vmem [shape: f32[1,32], index: 2, kind: input, shape index: {}]
  %s3 = inlined_call_operand.vmem [shape: bf16[32,256], index: 3, kind: input, shape index: {}]
  %s4 = inlined_call_operand.vmem [shape: f32[1,256], index: 4, kind: input, shape index: {}]
  %s5 = inlined_call_operand.vmem [shape: bf16[128,32], index: 5, kind: input, shape index: {}]
  %s6 = inlined_call_operand.vmem [shape: f32[1,32], index: 6, kind: input, shape index: {}]
  %s7 = inlined_call_operand.hbm [shape: f32[16,32], index: 7, kind: output, shape index: {}]
  %s8 = sld [smem:[#allocation0]]
  $region38: #{tpu_custom_call.1} parent=0
    _
  %s10 = ssub.s32 1, %s8
  %s11 = scalar_select 0, %s10, %s8
  $region1: #{tpu_custom_call.1} parent=0
    #allocation2 [shape = 'u8[8192]{0}', space=vmem, size = 0x2000, scoped, tag = 'output window, operand 0, single buffered']
    #allocation3 [shape = 's32[1]{0}', space=sflag, size = 0x4, scoped, tag = 'scoped memory for tpu_custom_call.1']
    %12 = vsyncpa [#allocation3], 0
    // Predicated region
    $region2: #{tpu_custom_call.1} parent=1 // pred_check
      _
    $region3: #{tpu_custom_call.1} parent=1 // pred_check_branch
      %14 = sbr.rel (0) target = $region5
    $region4: #{tpu_custom_call.1} parent=1 // pred_region
      _
    $region5: #{tpu_custom_call.1} parent=1 // pred_fallthru
      _
    // Predicated region
    $region6: #{tpu_custom_call.1} parent=1 // pred_check
      _
    $region7: #{tpu_custom_call.1} parent=1 // pred_check_branch
      %16 = sbr.rel (0) target = $region9
    $region8: #{tpu_custom_call.1} parent=1 // pred_region
      _
    $region9: #{tpu_custom_call.1} parent=1 // pred_fallthru
      _
    // Predicated region
    $region10: #{tpu_custom_call.1} parent=1 // pred_check
      _
    $region11: #{tpu_custom_call.1} parent=1 // pred_check_branch
      %18 = sbr.rel (0) target = $region13
    $region12: #{tpu_custom_call.1} parent=1 // pred_region
      _
    $region13: #{tpu_custom_call.1} parent=1 // pred_fallthru
      _
    // Predicated region
    $region14: #{tpu_custom_call.1} parent=1 // pred_check
      _
    $region15: #{tpu_custom_call.1} parent=1 // pred_check_branch
      %20 = sbr.rel (0) target = $region17
    $region16: #{tpu_custom_call.1} parent=1 // pred_region
      _
    $region17: #{tpu_custom_call.1} parent=1 // pred_fallthru
      _
    // Predicated region
    $region18: #{tpu_custom_call.1} parent=1 // pred_check
      _
    $region19: #{tpu_custom_call.1} parent=1 // pred_check_branch
      %22 = sbr.rel (0) target = $region21
    $region20: #{tpu_custom_call.1} parent=1 // pred_region
      _
    $region21: #{tpu_custom_call.1} parent=1 // pred_fallthru
      _
    // Predicated region
    $region22: #{tpu_custom_call.1} parent=1 // pred_check
      _
    $region23: #{tpu_custom_call.1} parent=1 // pred_check_branch
      %24 = sbr.rel (0) target = $region25
    $region24: #{tpu_custom_call.1} parent=1 // pred_region
      _
    $region25: #{tpu_custom_call.1} parent=1 // pred_fallthru
      _
    // Predicated region
    $region26: #{tpu_custom_call.1} parent=1 // pred_check
      _
    $region27: #{tpu_custom_call.1} parent=1 // pred_check_branch
      %26 = sbr.rel (0) target = $region29
    $region28: #{tpu_custom_call.1} parent=1 // pred_region
      _
    $region29: #{tpu_custom_call.1} parent=1 // pred_fallthru
      _
    %v28 = vld [vmem:[%s0] sm:$0xff]
    %v29 = vld [vmem:[%s0 + $0x8] sm:$0xff]
    %vm30 = vcmask 261120
    %v31 = vsel %vm30, %v28, 0.0
    %32 = vadd.xlane.f32.xlu0 %v31
    %v33 = vpop.xlane.xlu0 %32
    %v34 = vsel %vm30, %v29, 0.0
    %35 = vadd.xlane.f32.xlu0 %v34
    %v36 = vpop.xlane.xlu0 %35
    %v37 = vrcp.pop 32.0
    %v38 = vmul.f32 %v33, %v37
    %v39 = vmul.f32 %v36, %v37
    %v40 = vsub.f32 %v28, %v38
    %v41 = vsub.f32 %v29, %v39
    %v42 = vmul.f32 %v40, %v40
    %v43 = vmul.f32 %v41, %v41
    %v44 = vsel %vm30, %v42, 0.0
    %45 = vadd.xlane.f32.xlu0 %v44
    %v46 = vpop.xlane.xlu0 %45
    %v47 = vsel %vm30, %v43, 0.0
    %48 = vadd.xlane.f32.xlu0 %v47
    %v49 = vpop.xlane.xlu0 %48
    %v50 = vmul.f32 %v46, %v37
    %v51 = vmul.f32 %v49, %v37
    %v52 = vadd.f32 %v50, 1e-05
    %v53 = vadd.f32 %v51, 1e-05
    %v54 = vrsqrt.pop %v52
    %v55 = vrsqrt.pop %v53
    %v56 = vmul.f32 %v40, %v54
    %v57 = vmul.f32 %v41, %v55
    %v58 = vld [vmem:[%s1] sm:$0x1]
    %v60 = vlaneseq
    %v61 = vshrl.u32 %v60, 7
    %v62 = vsub.s32 0, %v61
    %v63 = vrot.slane %v58, %v62
    %v65 = vmul.f32 %v56, %v63
    %v66 = vmul.f32 %v57, %v63
    %v67 = vld [vmem:[%s2] sm:$0x1]
    %v69 = vlaneseq
    %v70 = vshrl.u32 %v69, 7
    %v71 = vsub.s32 0, %v70
    %v72 = vrot.slane %v67, %v71
    %v74 = vadd.f32 %v65, %v72
    %v75 = vadd.f32 %v66, %v72
    %v76 = vpack.c.bf16 %v75, %v74
    %v77 = vld [vmem:[%s3] sm:$0xf]
    %v78 = vld [vmem:[%s3 + $0x8] sm:$0xf]
    %v79 = vld [vmem:[%s3 + $0x10] sm:$0xf]
    %v80 = vld [vmem:[%s3 + $0x18] sm:$0xf]
    %v81 = vld [vmem:[%s4] sm:$0x1]
    %v83 = vlaneseq
    %v84 = vshrl.u32 %v83, 7
    %v85 = vsub.s32 0, %v84
    %v86 = vrot.slane %v81, %v85
    %v92 = vunpack.c.l.b16 %v77
    %v93 = vunpack.c.l.b16 %v78
    %v94 = vunpack.c.l.b16 %v79
    %v95 = vunpack.c.l.b16 %v80
    %v96 = vpack.c.b16 %v93, %v92
    %v97 = vpack.c.b16 %v95, %v94
    %v101 = vsel %vm30, %v76, 0
    %103 = vmatprep.subr.bf16.mxu0 0
    %104 = vmatpush1.bf16.msra.mxu0 0
    %105 = vmatprep.subr.bf16.mxu0 0
    %106 = vmatpush1.bf16.msra.mxu0 0
    %107 = vmatprep.subr.bf16.mxu0 0
    %108 = vmatpush1.bf16.msra.mxu0 0
    %109 = vmatprep.subr.bf16.mxu0 0
    %110 = vmatpush1.bf16.msra.mxu0 0
    %111 = vmatprep.subr.bf16.mxu0 0
    %112 = vmatpush1.bf16.msra.mxu0 0
    %113 = vmatprep.subr.bf16.mxu0 0
    %114 = vmatpush1.bf16.msra.mxu0 0
    %115 = vmatprep.subr.bf16.mxu0 0
    %116 = vmatpush1.bf16.msra.mxu0 %v97
    %117 = vmatprep.subr.bf16.mxu0 0
    %118 = vmatpush1.bf16.msra.mxu0 %v96
    %119 = vmatprep.subr.bf16.mxu0 0
    %120 = vmatpush2.bf16.msra.mxu0 0
    %121 = vmatprep.subr.bf16.mxu0 0
    %122 = vmatpush2.bf16.msra.mxu0 0
    %123 = vmatprep.subr.bf16.mxu0 0
    %124 = vmatpush2.bf16.msra.mxu0 0
    %125 = vmatprep.subr.bf16.mxu0 0
    %126 = vmatpush2.bf16.msra.mxu0 0
    %127 = vmatprep.subr.bf16.mxu0 0
    %128 = vmatpush2.bf16.msra.mxu0 0
    %129 = vmatprep.subr.bf16.mxu0 0
    %130 = vmatpush2.bf16.msra.mxu0 0
    %131 = vmatprep.subr.bf16.mxu0 0
    %132 = vmatpush2.bf16.msra.mxu0 0
    %133 = vmatprep.subr.bf16.mxu0 0
    %134 = vmatpush2.bf16.msra.mxu0 0
    %135 = vmatprep.mubr.bf16.mxu0 0
    %136 = vmatmul.mubr.bf16.gmra.mxu0 %v101
    %v137 = vpop.f32.mrf.mxu0
    %v138 = vadd.f32 %v86, %v137
    %v139 = vpop.f32.mrf.mxu0
    %v140 = vpop.f32.mrf.mxu0
    %v141 = vadd.f32 %v86, %v140
    %v142 = vpop.f32.mrf.mxu0
    %143 = vdwg.mxu0
    %v144 = vld [vmem:[%s3 + $0x4] sm:$0xf]
    %v145 = vld [vmem:[%s3 + $0xc] sm:$0xf]
    %v146 = vld [vmem:[%s3 + $0x14] sm:$0xf]
    %v147 = vld [vmem:[%s3 + $0x1c] sm:$0xf]
    %v148 = vld [vmem:[%s4 + $0x1] sm:$0x1]
    %v150 = vlaneseq
    %v151 = vshrl.u32 %v150, 7
    %v152 = vsub.s32 0, %v151
    %v153 = vrot.slane %v148, %v152
    %v159 = vunpack.c.l.b16 %v144
    %v160 = vunpack.c.l.b16 %v145
    %v161 = vunpack.c.l.b16 %v146
    %v162 = vunpack.c.l.b16 %v147
    %v163 = vpack.c.b16 %v160, %v159
    %v164 = vpack.c.b16 %v162, %v161
    %167 = vmatprep.subr.bf16.mxu0 0
    %168 = vmatpush1.bf16.msra.mxu0 0
    %169 = vmatprep.subr.bf16.mxu0 0
    %170 = vmatpush1.bf16.msra.mxu0 0
    %171 = vmatprep.subr.bf16.mxu0 0
    %172 = vmatpush1.bf16.msra.mxu0 0
    %173 = vmatprep.subr.bf16.mxu0 0
    %174 = vmatpush1.bf16.msra.mxu0 0
    %175 = vmatprep.subr.bf16.mxu0 0
    %176 = vmatpush1.bf16.msra.mxu0 0
    %177 = vmatprep.subr.bf16.mxu0 0
    %178 = vmatpush1.bf16.msra.mxu0 0
    %179 = vmatprep.subr.bf16.mxu0 0
    %180 = vmatpush1.bf16.msra.mxu0 %v164
    %181 = vmatprep.subr.bf16.mxu0 0
    %182 = vmatpush1.bf16.msra.mxu0 %v163
    %183 = vmatprep.subr.bf16.mxu0 0
    %184 = vmatpush2.bf16.msra.mxu0 0
    %185 = vmatprep.subr.bf16.mxu0 0
    %186 = vmatpush2.bf16.msra.mxu0 0
    %187 = vmatprep.subr.bf16.mxu0 0
    %188 = vmatpush2.bf16.msra.mxu0 0
    %189 = vmatprep.subr.bf16.mxu0 0
    %190 = vmatpush2.bf16.msra.mxu0 0
    %191 = vmatprep.subr.bf16.mxu0 0
    %192 = vmatpush2.bf16.msra.mxu0 0
    %193 = vmatprep.subr.bf16.mxu0 0
    %194 = vmatpush2.bf16.msra.mxu0 0
    %195 = vmatprep.subr.bf16.mxu0 0
    %196 = vmatpush2.bf16.msra.mxu0 0
    %197 = vmatprep.subr.bf16.mxu0 0
    %198 = vmatpush2.bf16.msra.mxu0 0
    %199 = vmatprep.mubr.bf16.mxu0 0
    %200 = vmatmul.mubr.bf16.gmra.mxu0 %v101
    %v201 = vpop.f32.mrf.mxu0
    %v202 = vadd.f32 %v153, %v201
    %v203 = vpop.f32.mrf.mxu0
    %v204 = vpop.f32.mrf.mxu0
    %v205 = vadd.f32 %v153, %v204
    %v206 = vpop.f32.mrf.mxu0
    %207 = vdwg.mxu0
    %v208 = vxor.u32 %v138, 2147483648
    %v209 = vxor.u32 %v141, 2147483648
    %v210 = vmul.f32 %v208, 1.442695
    %v211 = vpow.pop %v210
    %v212 = vmul.f32 %v209, 1.442695
    %v213 = vpow.pop %v212
    %v214 = vadd.f32 %v211, 1.0
    %v215 = vadd.f32 %v213, 1.0
    %v216 = vrcp.pop %v214
    %v217 = vmul.f32 1.0, %v216
    %v218 = vrcp.pop %v215
    %v219 = vmul.f32 1.0, %v218
    %v220 = vmul.f32 %v138, %v217
    %v221 = vmul.f32 %v141, %v219
    %v222 = vmul.f32 %v220, %v202
    %v223 = vmul.f32 %v221, %v205
    %v224 = vpack.c.bf16 %v223, %v222
    %v225 = vld [vmem:[%s5] sm:$0xf]
    %v226 = vld [vmem:[%s5 + $0x4] sm:$0xf]
    %v227 = vld [vmem:[%s5 + $0x8] sm:$0xf]
    %v228 = vld [vmem:[%s5 + $0xc] sm:$0xf]
    %v229 = vld [vmem:[%s5 + $0x10] sm:$0xf]
    %v230 = vld [vmem:[%s5 + $0x14] sm:$0xf]
    %v231 = vld [vmem:[%s5 + $0x18] sm:$0xf]
    %v232 = vld [vmem:[%s5 + $0x1c] sm:$0xf]
    %v233 = vld [vmem:[%s5 + $0x20] sm:$0xf]
    %v234 = vld [vmem:[%s5 + $0x24] sm:$0xf]
    %v235 = vld [vmem:[%s5 + $0x28] sm:$0xf]
    %v236 = vld [vmem:[%s5 + $0x2c] sm:$0xf]
    %v237 = vld [vmem:[%s5 + $0x30] sm:$0xf]
    %v238 = vld [vmem:[%s5 + $0x34] sm:$0xf]
    %v239 = vld [vmem:[%s5 + $0x38] sm:$0xf]
    %v240 = vld [vmem:[%s5 + $0x3c] sm:$0xf]
    %v241 = vld [vmem:[%s6] sm:$0x1]
    %v243 = vlaneseq
    %v244 = vshrl.u32 %v243, 7
    %v245 = vsub.s32 0, %v244
    %v246 = vrot.slane %v241, %v245
    %v264 = vunpack.c.l.b16 %v225
    %v265 = vunpack.c.l.b16 %v226
    %v266 = vunpack.c.l.b16 %v227
    %v267 = vunpack.c.l.b16 %v228
    %v268 = vunpack.c.l.b16 %v229
    %v269 = vunpack.c.l.b16 %v230
    %v270 = vunpack.c.l.b16 %v231
    %v271 = vunpack.c.l.b16 %v232
    %v272 = vunpack.c.l.b16 %v233
    %v273 = vunpack.c.l.b16 %v234
    %v274 = vunpack.c.l.b16 %v235
    %v275 = vunpack.c.l.b16 %v236
    %v276 = vunpack.c.l.b16 %v237
    %v277 = vunpack.c.l.b16 %v238
    %v278 = vunpack.c.l.b16 %v239
    %v279 = vunpack.c.l.b16 %v240
    %v280 = vpack.c.b16 %v265, %v264
    %v281 = vpack.c.b16 %v267, %v266
    %v282 = vpack.c.b16 %v269, %v268
    %v283 = vpack.c.b16 %v271, %v270
    %v284 = vpack.c.b16 %v273, %v272
    %v285 = vpack.c.b16 %v275, %v274
    %v286 = vpack.c.b16 %v277, %v276
    %v287 = vpack.c.b16 %v279, %v278
    %296 = vmatprep.subr.bf16.mxu0 0
    %297 = vmatpush1.bf16.msra.mxu0 %v287
    %298 = vmatprep.subr.bf16.mxu0 0
    %299 = vmatpush1.bf16.msra.mxu0 %v286
    %300 = vmatprep.subr.bf16.mxu0 0
    %301 = vmatpush1.bf16.msra.mxu0 %v285
    %302 = vmatprep.subr.bf16.mxu0 0
    %303 = vmatpush1.bf16.msra.mxu0 %v284
    %304 = vmatprep.subr.bf16.mxu0 0
    %305 = vmatpush1.bf16.msra.mxu0 %v283
    %306 = vmatprep.subr.bf16.mxu0 0
    %307 = vmatpush1.bf16.msra.mxu0 %v282
    %308 = vmatprep.subr.bf16.mxu0 0
    %309 = vmatpush1.bf16.msra.mxu0 %v281
    %310 = vmatprep.subr.bf16.mxu0 0
    %311 = vmatpush1.bf16.msra.mxu0 %v280
    %312 = vmatprep.subr.bf16.mxu0 0
    %313 = vmatpush2.bf16.msra.mxu0 0
    %314 = vmatprep.subr.bf16.mxu0 0
    %315 = vmatpush2.bf16.msra.mxu0 0
    %316 = vmatprep.subr.bf16.mxu0 0
    %317 = vmatpush2.bf16.msra.mxu0 0
    %318 = vmatprep.subr.bf16.mxu0 0
    %319 = vmatpush2.bf16.msra.mxu0 0
    %320 = vmatprep.subr.bf16.mxu0 0
    %321 = vmatpush2.bf16.msra.mxu0 0
    %322 = vmatprep.subr.bf16.mxu0 0
    %323 = vmatpush2.bf16.msra.mxu0 0
    %324 = vmatprep.subr.bf16.mxu0 0
    %325 = vmatpush2.bf16.msra.mxu0 0
    %326 = vmatprep.subr.bf16.mxu0 0
    %327 = vmatpush2.bf16.msra.mxu0 0
    %328 = vmatprep.mubr.bf16.mxu0 0
    %329 = vmatmul.mubr.bf16.gmra.mxu0 %v224
    %v330 = vpop.f32.mrf.mxu0
    %v331 = vadd.f32 %v246, %v330
    %v332 = vpop.f32.mrf.mxu0
    %v333 = vpop.f32.mrf.mxu0
    %v334 = vadd.f32 %v246, %v333
    %v335 = vpop.f32.mrf.mxu0
    %336 = vdwg.mxu0
    %337 = vst.msk [vmem:[#allocation2] sm:$0xff] %vm30, %v331
    %338 = vst.msk [vmem:[#allocation2 + $0x8] sm:$0xff] %vm30, %v334
    // Predicated region
    $region30: #{tpu_custom_call.1} parent=1 // pred_check
      _
    $region31: #{tpu_custom_call.1} parent=1 // pred_check_branch
      %340 = sbr.rel (0) target = $region33
    $region32: #{tpu_custom_call.1} parent=1 // pred_region
      %s342 = ssub.s32 256, 256
      %343 = vsyncadd [#allocation3], %s342
      %s344 = sshll.u32 [#allocation2], 4
      %s345 = int_to_ptr.vmem [resolvable:$true] %s344
      %350 = dma.vmem_to_hbm [thread:$0]  %s345, 256, %s7, [#allocation3], 128, 128, 8
    $region33: #{tpu_custom_call.1} parent=1 // pred_fallthru
      _
    // Predicated region
    $region34: #{tpu_custom_call.1} parent=1 // pred_check
      _
    $region35: #{tpu_custom_call.1} parent=1 // pred_check_branch
      %352 = sbr.rel (0) target = $region37
    $region36: #{tpu_custom_call.1} parent=1 // pred_region
      %353 = dma.done [#allocation3], 256
    $region37: #{tpu_custom_call.1} parent=1 // pred_fallthru
      _
    %354 = vsyncpa [#allocation3], 1

</llo_original>
